<compile_context>
chip_gen: v6e
topology: v6e:2x2x1
jax: 0.10.0
libtpu: 0.0.40
codegen_flags: <defaults>
</compile_context>

<pallas_src>
import jax
import jax.numpy as jnp
from jax.experimental import pallas as pl
from jax.experimental.pallas import tpu as pltpu

LN_EPS = 1e-5  # PyTorch nn.LayerNorm default


def _round_up(a, m):
    return ((a + m - 1) // m) * m


def _layernorm(x, gamma, beta):
    mu = jnp.mean(x, axis=-1, keepdims=True)
    var = jnp.mean((x - mu) * (x - mu), axis=-1, keepdims=True)  # biased var (PyTorch LN)
    return (x - mu) * jax.lax.rsqrt(var + LN_EPS) * gamma + beta


def residual_block_kernel(x_ref, vecs_ref, w1_ref, w2_ref, o_ref):
    x = x_ref[...].astype(jnp.float32)

    vecs = vecs_ref[...].astype(jnp.float32)        # (8, H): packed LN/bias rows
    g1, be1, b1 = vecs[0:1], vecs[1:2], vecs[2:3]
    g2, be2, b2 = vecs[3:4], vecs[4:5], vecs[5:6]

    # LayerNorm 1 + ReLU (f32 VPU math)
    h = jnp.maximum(_layernorm(x, g1, be1), 0.0)

    # Linear 1: bf16 x bf16 on the MXU, f32 accumulate
    h = jnp.dot(h.astype(jnp.bfloat16), w1_ref[...],
                preferred_element_type=jnp.float32) + b1

    # LayerNorm 2 + ReLU
    h = jnp.maximum(_layernorm(h, g2, be2), 0.0)

    # Dropout: identity (eval mode)

    # Linear 2: bf16 x bf16 on the MXU, f32 accumulate
    h = jnp.dot(h.astype(jnp.bfloat16), w2_ref[...],
                preferred_element_type=jnp.float32) + b2

    # Residual add
    o_ref[...] = (x + h).astype(o_ref.dtype)


def _vmem_limit_bytes(tile_b, H):
    w_bytes = 2 * H * H * 2 * 2            # 2 bf16 weights, double-buffered
    io_bytes = 2 * tile_b * H * 4 * 2      # x + out tiles, f32, double-buffered
    vec_bytes = 8 * H * 4 * 2              # packed vector params
    scratch = 4 * tile_b * H * 4           # in-kernel f32 intermediates (headroom)
    est = w_bytes + io_bytes + vec_bytes + scratch + (4 << 20)
    return int(min(max(est, 32 << 20), 64 << 20))   # stay within v7x physical VMEM


def residual_block(x, params, *, tile_b=256):
    """x: (B, H) float32. params: LN params / biases f32 (1, H); w1/w2 bf16 (H_in, H_out)."""
    B, H = x.shape

    # Clamp tile to the (8-padded) batch for small problems; keep it MXU-friendly otherwise.
    tile_b = max(8, min(tile_b, _round_up(B, 8)))

    # Pad batch so every grid step is a full tile (avoids stale-row LayerNorm garbage).
    pb = _round_up(B, tile_b)
    x_p = x if pb == B else jnp.pad(x, ((0, pb - B), (0, 0)))
    grid = (pb // tile_b,)

    # Pack the six (1, H) vector params into one resident (8, H) block.
    vecs = jnp.concatenate(
        [params["ln1_g"], params["ln1_b"], params["b1"],
         params["ln2_g"], params["ln2_b"], params["b2"],
         jnp.zeros((2, H), jnp.float32)], axis=0).astype(jnp.float32)

    w1 = params["w1"].astype(jnp.bfloat16)
    w2 = params["w2"].astype(jnp.bfloat16)

    x_spec = pl.BlockSpec((tile_b, H), lambda i: (i, 0))
    vec_spec = pl.BlockSpec((8, H), lambda i: (0, 0))     # resident, constant index
    mat_spec = pl.BlockSpec((H, H), lambda i: (0, 0))     # resident bf16 weights

    cost = pl.CostEstimate(
        flops=4 * pb * H * H,                 # two (pb,H)x(H,H) matmuls
        transcendentals=2 * pb,               # rsqrt per row per LayerNorm
        bytes_accessed=2 * pb * H * 4 + 2 * H * H * 2 + 8 * H * 4,
    )

    out = pl.pallas_call(
        residual_block_kernel,
        out_shape=jax.ShapeDtypeStruct((pb, H), x.dtype),
        grid_spec=pltpu.PrefetchScalarGridSpec(
            num_scalar_prefetch=0,
            grid=grid,
            in_specs=[x_spec, vec_spec, mat_spec, mat_spec],
            out_specs=x_spec,
        ),
        compiler_params=pltpu.CompilerParams(
            dimension_semantics=("parallel",),
            vmem_limit_bytes=_vmem_limit_bytes(tile_b, H),
        ),
        cost_estimate=cost,
    )(x_p, vecs, w1, w2)

    return out if pb == B else out[:B]


def init_params(key, hidden_dim):
    """Deterministic synthetic parameters matching the PyTorch module's shapes."""
    k1, k2, k3, k4 = jax.random.split(key, 4)
    # nn.Linear weights are (out, in); pre-transpose to (in, out) for the kernel's h @ W.
    w1 = (jax.random.normal(k1, (hidden_dim, hidden_dim), jnp.float32)
          / jnp.sqrt(hidden_dim)).T
    w2 = (jax.random.normal(k2, (hidden_dim, hidden_dim), jnp.float32)
          / jnp.sqrt(hidden_dim)).T
    b1 = 0.01 * jax.random.normal(k3, (1, hidden_dim), jnp.float32)
    b2 = 0.01 * jax.random.normal(k4, (1, hidden_dim), jnp.float32)
    return {
        "ln1_g": jnp.ones((1, hidden_dim), jnp.float32),
        "ln1_b": jnp.zeros((1, hidden_dim), jnp.float32),
        "w1": w1.astype(jnp.bfloat16), "b1": b1,
        "ln2_g": jnp.ones((1, hidden_dim), jnp.float32),
        "ln2_b": jnp.zeros((1, hidden_dim), jnp.float32),
        "w2": w2.astype(jnp.bfloat16), "b2": b2,
    }


def residual_block_ref(x, p):
    """Pure-JAX reference of the PyTorch forward (eval mode), same bf16-MXU numerics."""
    def ln(h, g, b):
        mu = jnp.mean(h, axis=-1, keepdims=True)
        var = jnp.mean((h - mu) ** 2, axis=-1, keepdims=True)
        return (h - mu) / jnp.sqrt(var + LN_EPS) * g + b

    h = jnp.maximum(ln(x, p["ln1_g"], p["ln1_b"]), 0.0)
    h = jnp.dot(h.astype(jnp.bfloat16), p["w1"],
                preferred_element_type=jnp.float32) + p["b1"]
    h = jnp.maximum(ln(h, p["ln2_g"], p["ln2_b"]), 0.0)
    h = jnp.dot(h.astype(jnp.bfloat16), p["w2"],
                preferred_element_type=jnp.float32) + p["b2"]
    return x + h


if __name__ == "__main__":
    key = jax.random.PRNGKey(0)
    kx, kp = jax.random.split(key)

    batch, hidden_dim = 64, 256   # hidden_dim multiple of 128 -> lane-dense blocks
    x = jax.random.normal(kx, (batch, hidden_dim), jnp.float32)
    params = init_params(kp, hidden_dim)

    out = residual_block(x, params)
    out = jax.block_until_ready(out)

    ref = residual_block_ref(x, params)
    assert out.shape == (batch, hidden_dim)
    assert jnp.allclose(out, ref, atol=2e-2, rtol=2e-2), "mismatch vs reference"

    print("KERNEL_OK")
</pallas_src>

<mosaic_0001>
module attributes {stable_mosaic.version = 11 : i64} {
  func.func @residual_block_kernel(%arg0: i32, %arg1: memref<64x256xf32, #tpu.memory_space<vmem>>, %arg2: memref<8x256xf32, #tpu.memory_space<vmem>>, %arg3: memref<256x256xbf16, #tpu.memory_space<vmem>>, %arg4: memref<256x256xbf16, #tpu.memory_space<vmem>>, %arg5: memref<64x256xf32, #tpu.memory_space<vmem>>) attributes {dimension_semantics = [#tpu.dimension_semantics<parallel>], iteration_bounds = array<i64: 1>, scalar_prefetch = 0 : i64, scratch_operands = 0 : i64, tpu.core_type = #tpu.core_type<tc>, window_params = [{transform_indices = @transform_0, window_bounds = array<i64: 64, 256>}, {pipeline_mode = #tpu.pipeline_mode<synchronous>, transform_indices = @transform_1, window_bounds = array<i64: 8, 256>}, {pipeline_mode = #tpu.pipeline_mode<synchronous>, transform_indices = @transform_2, window_bounds = array<i64: 256, 256>}, {pipeline_mode = #tpu.pipeline_mode<synchronous>, transform_indices = @transform_3, window_bounds = array<i64: 256, 256>}, {transform_indices = @transform_4, window_bounds = array<i64: 64, 256>}]} {
    %c0 = arith.constant 0 : index
    %c0_0 = arith.constant 0 : index
    %0 = vector.load %arg1[%c0, %c0_0] : memref<64x256xf32, #tpu.memory_space<vmem>>, vector<64x256xf32>
    %c0_1 = arith.constant 0 : index
    %c0_2 = arith.constant 0 : index
    %1 = vector.load %arg2[%c0_1, %c0_2] : memref<8x256xf32, #tpu.memory_space<vmem>>, vector<8x256xf32>
    %2 = vector.extract_strided_slice %1 {offsets = [0, 0], sizes = [1, 256], strides = [1, 1]} : vector<8x256xf32> to vector<1x256xf32>
    %3 = vector.extract_strided_slice %1 {offsets = [1, 0], sizes = [1, 256], strides = [1, 1]} : vector<8x256xf32> to vector<1x256xf32>
    %4 = vector.extract_strided_slice %1 {offsets = [2, 0], sizes = [1, 256], strides = [1, 1]} : vector<8x256xf32> to vector<1x256xf32>
    %5 = vector.extract_strided_slice %1 {offsets = [3, 0], sizes = [1, 256], strides = [1, 1]} : vector<8x256xf32> to vector<1x256xf32>
    %6 = vector.extract_strided_slice %1 {offsets = [4, 0], sizes = [1, 256], strides = [1, 1]} : vector<8x256xf32> to vector<1x256xf32>
    %7 = vector.extract_strided_slice %1 {offsets = [5, 0], sizes = [1, 256], strides = [1, 1]} : vector<8x256xf32> to vector<1x256xf32>
    %cst = arith.constant dense<0.000000e+00> : vector<64xf32>
    %8 = vector.multi_reduction <add>, %0, %cst [1] : vector<64x256xf32> to vector<64xf32>
    %9 = vector.shape_cast %8 : vector<64xf32> to vector<64x1xf32>
    %cst_3 = arith.constant 2.560000e+02 : f32
    %10 = vector.broadcast %cst_3 : f32 to vector<64x1xf32>
    %11 = arith.divf %9, %10 : vector<64x1xf32>
    %12 = vector.broadcast %11 : vector<64x1xf32> to vector<64x256xf32>
    %13 = arith.subf %0, %12 : vector<64x256xf32>
    %14 = vector.broadcast %11 : vector<64x1xf32> to vector<64x256xf32>
    %15 = arith.subf %0, %14 : vector<64x256xf32>
    %16 = arith.mulf %13, %15 : vector<64x256xf32>
    %cst_4 = arith.constant dense<0.000000e+00> : vector<64xf32>
    %17 = vector.multi_reduction <add>, %16, %cst_4 [1] : vector<64x256xf32> to vector<64xf32>
    %18 = vector.shape_cast %17 : vector<64xf32> to vector<64x1xf32>
    %cst_5 = arith.constant 2.560000e+02 : f32
    %19 = vector.broadcast %cst_5 : f32 to vector<64x1xf32>
    %20 = arith.divf %18, %19 : vector<64x1xf32>
    %21 = vector.broadcast %11 : vector<64x1xf32> to vector<64x256xf32>
    %22 = arith.subf %0, %21 : vector<64x256xf32>
    %cst_6 = arith.constant 9.99999974E-6 : f32
    %23 = vector.broadcast %cst_6 : f32 to vector<64x1xf32>
    %24 = arith.addf %20, %23 : vector<64x1xf32>
    %25 = math.rsqrt %24 : vector<64x1xf32>
    %26 = vector.broadcast %25 : vector<64x1xf32> to vector<64x256xf32>
    %27 = arith.mulf %22, %26 : vector<64x256xf32>
    %28 = vector.broadcast %2 : vector<1x256xf32> to vector<64x256xf32>
    %29 = arith.mulf %27, %28 : vector<64x256xf32>
    %30 = vector.broadcast %3 : vector<1x256xf32> to vector<64x256xf32>
    %31 = arith.addf %29, %30 : vector<64x256xf32>
    %cst_7 = arith.constant 0.000000e+00 : f32
    %32 = vector.broadcast %cst_7 : f32 to vector<64x256xf32>
    %33 = arith.maximumf %31, %32 : vector<64x256xf32>
    %34 = arith.truncf %33 : vector<64x256xf32> to vector<64x256xbf16>
    %c0_8 = arith.constant 0 : index
    %c0_9 = arith.constant 0 : index
    %35 = vector.load %arg3[%c0_8, %c0_9] : memref<256x256xbf16, #tpu.memory_space<vmem>>, vector<256x256xbf16>
    %cst_10 = arith.constant dense<0.000000e+00> : vector<64x256xf32>
    %36 = tpu.matmul %34, %35, %cst_10 {dimension_numbers = #tpu.dot_dimension_numbers<[1], [0], [0], [1], [0, 0, 1, 1], [], []>} : vector<64x256xbf16>, vector<256x256xbf16>, vector<64x256xf32> -> vector<64x256xf32>
    %37 = vector.broadcast %4 : vector<1x256xf32> to vector<64x256xf32>
    %38 = arith.addf %36, %37 : vector<64x256xf32>
    %cst_11 = arith.constant dense<0.000000e+00> : vector<64xf32>
    %39 = vector.multi_reduction <add>, %38, %cst_11 [1] : vector<64x256xf32> to vector<64xf32>
    %40 = vector.shape_cast %39 : vector<64xf32> to vector<64x1xf32>
    %cst_12 = arith.constant 2.560000e+02 : f32
    %41 = vector.broadcast %cst_12 : f32 to vector<64x1xf32>
    %42 = arith.divf %40, %41 : vector<64x1xf32>
    %43 = vector.broadcast %42 : vector<64x1xf32> to vector<64x256xf32>
    %44 = arith.subf %38, %43 : vector<64x256xf32>
    %45 = vector.broadcast %42 : vector<64x1xf32> to vector<64x256xf32>
    %46 = arith.subf %38, %45 : vector<64x256xf32>
    %47 = arith.mulf %44, %46 : vector<64x256xf32>
    %cst_13 = arith.constant dense<0.000000e+00> : vector<64xf32>
    %48 = vector.multi_reduction <add>, %47, %cst_13 [1] : vector<64x256xf32> to vector<64xf32>
    %49 = vector.shape_cast %48 : vector<64xf32> to vector<64x1xf32>
    %cst_14 = arith.constant 2.560000e+02 : f32
    %50 = vector.broadcast %cst_14 : f32 to vector<64x1xf32>
    %51 = arith.divf %49, %50 : vector<64x1xf32>
    %52 = vector.broadcast %42 : vector<64x1xf32> to vector<64x256xf32>
    %53 = arith.subf %38, %52 : vector<64x256xf32>
    %cst_15 = arith.constant 9.99999974E-6 : f32
    %54 = vector.broadcast %cst_15 : f32 to vector<64x1xf32>
    %55 = arith.addf %51, %54 : vector<64x1xf32>
    %56 = math.rsqrt %55 : vector<64x1xf32>
    %57 = vector.broadcast %56 : vector<64x1xf32> to vector<64x256xf32>
    %58 = arith.mulf %53, %57 : vector<64x256xf32>
    %59 = vector.broadcast %5 : vector<1x256xf32> to vector<64x256xf32>
    %60 = arith.mulf %58, %59 : vector<64x256xf32>
    %61 = vector.broadcast %6 : vector<1x256xf32> to vector<64x256xf32>
    %62 = arith.addf %60, %61 : vector<64x256xf32>
    %cst_16 = arith.constant 0.000000e+00 : f32
    %63 = vector.broadcast %cst_16 : f32 to vector<64x256xf32>
    %64 = arith.maximumf %62, %63 : vector<64x256xf32>
    %65 = arith.truncf %64 : vector<64x256xf32> to vector<64x256xbf16>
    %c0_17 = arith.constant 0 : index
    %c0_18 = arith.constant 0 : index
    %66 = vector.load %arg4[%c0_17, %c0_18] : memref<256x256xbf16, #tpu.memory_space<vmem>>, vector<256x256xbf16>
    %cst_19 = arith.constant dense<0.000000e+00> : vector<64x256xf32>
    %67 = tpu.matmul %65, %66, %cst_19 {dimension_numbers = #tpu.dot_dimension_numbers<[1], [0], [0], [1], [0, 0, 1, 1], [], []>} : vector<64x256xbf16>, vector<256x256xbf16>, vector<64x256xf32> -> vector<64x256xf32>
    %68 = vector.broadcast %7 : vector<1x256xf32> to vector<64x256xf32>
    %69 = arith.addf %67, %68 : vector<64x256xf32>
    %70 = arith.addf %0, %69 : vector<64x256xf32>
    %c0_20 = arith.constant 0 : index
    %c0_21 = arith.constant 0 : index
    %71 = vector.load %arg5[%c0_20, %c0_21] : memref<64x256xf32, #tpu.memory_space<vmem>>, vector<64x256xf32>
    tpu.vector_store %arg5[%c0_20, %c0_21], %70 {strides = array<i32>} : memref<64x256xf32, #tpu.memory_space<vmem>>, vector<64x256xf32>,
    return
  }
  func.func @transform_0(%arg0: i32) -> (i32, i32) {
    %c0_i32 = arith.constant 0 : i32
    %c0_i32_0 = arith.constant 0 : i32
    return %arg0, %c0_i32 : i32, i32
  }
  func.func @transform_1(%arg0: i32) -> (i32, i32) {
    %c0_i32 = arith.constant 0 : i32
    %c0_i32_0 = arith.constant 0 : i32
    %c0_i32_1 = arith.constant 0 : i32
    return %c0_i32, %c0_i32_0 : i32, i32
  }
  func.func @transform_2(%arg0: i32) -> (i32, i32) {
    %c0_i32 = arith.constant 0 : i32
    %c0_i32_0 = arith.constant 0 : i32
    %c0_i32_1 = arith.constant 0 : i32
    return %c0_i32, %c0_i32_0 : i32, i32
  }
  func.func @transform_3(%arg0: i32) -> (i32, i32) {
    %c0_i32 = arith.constant 0 : i32
    %c0_i32_0 = arith.constant 0 : i32
    %c0_i32_1 = arith.constant 0 : i32
    return %c0_i32, %c0_i32_0 : i32, i32
  }
  func.func @transform_4(%arg0: i32) -> (i32, i32) {
    %c0_i32 = arith.constant 0 : i32
    %c0_i32_0 = arith.constant 0 : i32
    return %arg0, %c0_i32 : i32, i32
  }
}

</mosaic_0001>

<llo_original>
// kernel: tpu_custom_call.1
$region0: #{tpu_custom_call.1}
  #allocation0 [shape = 'u32[]', space=smem, size = 0x4, offset = 0x4, fixed_abs, tag = 'smem constant byte address 0x4 - core index']
  #allocation1 [shape = 'u32[144,128]{1,0:T(1,128)}', space=vmem, size = 0x12000, scoped, tag = 'internal scratch']
  %s0 = inlined_call_operand.hbm [shape: f32[64,256], index: 0, kind: input, shape index: {}]
  %s1 = inlined_call_operand.hbm [shape: f32[8,256], index: 1, kind: input, shape index: {}]
  %s2 = inlined_call_operand.hbm [shape: bf16[256,256], index: 2, kind: input, shape index: {}]
  %s3 = inlined_call_operand.hbm [shape: bf16[256,256], index: 3, kind: input, shape index: {}]
  %s4 = inlined_call_operand.hbm [shape: f32[64,256], index: 4, kind: output, shape index: {}]
  %s5 = sld [smem:[#allocation0]]
  $region42: #{tpu_custom_call.1} parent=0
    _
  %s7 = ssub.s32 1, %s5
  %s8 = scalar_select 0, %s7, %s5
  $region1: #{tpu_custom_call.1} parent=0
    #allocation2 [shape = 'u8[65536]{0}', space=vmem, size = 0x10000, scoped, tag = 'input window, operand 0, single buffered']
    #allocation3 [shape = 's32[1]{0}', space=sflag, size = 0x4, scoped, tag = 'scoped memory for tpu_custom_call.1']
    #allocation4 [shape = 's32[1]{0}', space=sflag, size = 0x4, scoped, tag = 'scoped memory for tpu_custom_call.1']
    #allocation5 [shape = 'u8[8192]{0}', space=vmem, size = 0x2000, scoped, tag = 'input window, operand 1, single buffered']
    #allocation6 [shape = 's32[1]{0}', space=sflag, size = 0x4, scoped, tag = 'scoped memory for tpu_custom_call.1']
    #allocation7 [shape = 'u8[131072]{0}', space=vmem, size = 0x20000, scoped, tag = 'input window, operand 2, single buffered']
    #allocation8 [shape = 'u8[131072]{0}', space=vmem, size = 0x20000, scoped, tag = 'input window, operand 3, single buffered']
    #allocation9 [shape = 's32[1]{0}', space=sflag, size = 0x4, scoped, tag = 'scoped memory for tpu_custom_call.1']
    #allocation10 [shape = 'u8[65536]{0}', space=vmem, size = 0x10000, scoped, tag = 'output window, operand 0, single buffered']
    %9 = vsyncpa [#allocation3], 0
    %10 = vsyncpa [#allocation6], 0
    %11 = vsyncpa [#allocation9], 0
    %12 = vsyncpa [#allocation4], 0
    // Predicated region
    $region2: #{tpu_custom_call.1} parent=1 // pred_check
      _
    $region3: #{tpu_custom_call.1} parent=1 // pred_check_branch
      %14 = sbr.rel (0) target = $region5
    $region4: #{tpu_custom_call.1} parent=1 // pred_region
      %s16 = ssub.s32 2048, 2048
      %17 = vsyncadd [#allocation3], %s16
      %s18 = sshll.u32 [#allocation2], 4
      %s19 = int_to_ptr.vmem [resolvable:$true] %s18
      %24 = dma.hbm_to_vmem [thread:$0]  %s0, 2048, %s19, [#allocation3], 256, 256, 16
    $region5: #{tpu_custom_call.1} parent=1 // pred_fallthru
      _
    // Predicated region
    $region6: #{tpu_custom_call.1} parent=1 // pred_check
      _
    $region7: #{tpu_custom_call.1} parent=1 // pred_check_branch
      %26 = sbr.rel (0) target = $region9
    $region8: #{tpu_custom_call.1} parent=1 // pred_region
      %s28 = ssub.s32 256, 256
      %29 = vsyncadd [#allocation6], %s28
      %s31 = sshll.u32 [#allocation5], 4
      %s32 = int_to_ptr.vmem [resolvable:$true] %s31
      %34 = dma.hbm_to_vmem [thread:$0]  %s1, 256, %s32, [#allocation6]
    $region9: #{tpu_custom_call.1} parent=1 // pred_fallthru
      _
    // Predicated region
    $region10: #{tpu_custom_call.1} parent=1 // pred_check
      _
    $region11: #{tpu_custom_call.1} parent=1 // pred_check_branch
      %36 = sbr.rel (0) target = $region13
    $region12: #{tpu_custom_call.1} parent=1 // pred_region
      %s38 = ssub.s32 4096, 4096
      %39 = vsyncadd [#allocation6], %s38
      %s40 = sshll.u32 [#allocation7], 4
      %s41 = int_to_ptr.vmem [resolvable:$true] %s40
      %46 = dma.hbm_to_vmem [thread:$0]  %s2, 4096, %s41, [#allocation6], 128, 128, 8
    $region13: #{tpu_custom_call.1} parent=1 // pred_fallthru
      _
    // Predicated region
    $region14: #{tpu_custom_call.1} parent=1 // pred_check
      _
    $region15: #{tpu_custom_call.1} parent=1 // pred_check_branch
      %48 = sbr.rel (0) target = $region17
    $region16: #{tpu_custom_call.1} parent=1 // pred_region
      %s50 = ssub.s32 4096, 4096
      %51 = vsyncadd [#allocation9], %s50
      %s52 = sshll.u32 [#allocation8], 4
      %s53 = int_to_ptr.vmem [resolvable:$true] %s52
      %58 = dma.hbm_to_vmem [thread:$0]  %s3, 4096, %s53, [#allocation9], 128, 128, 8
    $region17: #{tpu_custom_call.1} parent=1 // pred_fallthru
      _
    // Predicated region
    $region18: #{tpu_custom_call.1} parent=1 // pred_check
      _
    $region19: #{tpu_custom_call.1} parent=1 // pred_check_branch
      %60 = sbr.rel (0) target = $region21
    $region20: #{tpu_custom_call.1} parent=1 // pred_region
      %61 = dma.done [#allocation3], 2048
    $region21: #{tpu_custom_call.1} parent=1 // pred_fallthru
      _
    // Predicated region
    $region22: #{tpu_custom_call.1} parent=1 // pred_check
      _
    $region23: #{tpu_custom_call.1} parent=1 // pred_check_branch
      %63 = sbr.rel (0) target = $region25
    $region24: #{tpu_custom_call.1} parent=1 // pred_region
      %64 = dma.done [#allocation6], 256
    $region25: #{tpu_custom_call.1} parent=1 // pred_fallthru
      _
    // Predicated region
    $region26: #{tpu_custom_call.1} parent=1 // pred_check
      _
    $region27: #{tpu_custom_call.1} parent=1 // pred_check_branch
      %66 = sbr.rel (0) target = $region29
    $region28: #{tpu_custom_call.1} parent=1 // pred_region
      %67 = dma.done [#allocation6], 4096
    $region29: #{tpu_custom_call.1} parent=1 // pred_fallthru
      _
    // Predicated region
    $region30: #{tpu_custom_call.1} parent=1 // pred_check
      _
    $region31: #{tpu_custom_call.1} parent=1 // pred_check_branch
      %69 = sbr.rel (0) target = $region33
    $region32: #{tpu_custom_call.1} parent=1 // pred_region
      %70 = dma.done [#allocation9], 4096
    $region33: #{tpu_custom_call.1} parent=1 // pred_fallthru
      _
    %v71 = vld [vmem:[#allocation2] sm:$0xff]
    %v72 = vld [vmem:[#allocation2 + $0x8] sm:$0xff]
    %v73 = vld [vmem:[#allocation2 + $0x10] sm:$0xff]
    %v74 = vld [vmem:[#allocation2 + $0x18] sm:$0xff]
    %v75 = vld [vmem:[#allocation2 + $0x20] sm:$0xff]
    %v76 = vld [vmem:[#allocation2 + $0x28] sm:$0xff]
    %v77 = vld [vmem:[#allocation2 + $0x30] sm:$0xff]
    %v78 = vld [vmem:[#allocation2 + $0x38] sm:$0xff]
    %v79 = vld [vmem:[#allocation2 + $0x40] sm:$0xff]
    %v80 = vld [vmem:[#allocation2 + $0x48] sm:$0xff]
    %v81 = vld [vmem:[#allocation2 + $0x50] sm:$0xff]
    %v82 = vld [vmem:[#allocation2 + $0x58] sm:$0xff]
    %v83 = vld [vmem:[#allocation2 + $0x60] sm:$0xff]
    %v84 = vld [vmem:[#allocation2 + $0x68] sm:$0xff]
    %v85 = vld [vmem:[#allocation2 + $0x70] sm:$0xff]
    %v86 = vld [vmem:[#allocation2 + $0x78] sm:$0xff]
    %v87 = vld [vmem:[#allocation5] sm:$0xff]
    %v88 = vld [vmem:[#allocation5 + $0x8] sm:$0xff]
    %v89 = vadd.f32 %v71, %v72
    %90 = vadd.xlane.f32.xlu0 %v89
    %v91 = vpop.xlane.xlu0 %90
    %v92 = vadd.f32 %v73, %v74
    %93 = vadd.xlane.f32.xlu0 %v92
    %v94 = vpop.xlane.xlu0 %93
    %v95 = vadd.f32 %v75, %v76
    %96 = vadd.xlane.f32.xlu0 %v95
    %v97 = vpop.xlane.xlu0 %96
    %v98 = vadd.f32 %v77, %v78
    %99 = vadd.xlane.f32.xlu0 %v98
    %v100 = vpop.xlane.xlu0 %99
    %v101 = vadd.f32 %v79, %v80
    %102 = vadd.xlane.f32.xlu0 %v101
    %v103 = vpop.xlane.xlu0 %102
    %v104 = vadd.f32 %v81, %v82
    %105 = vadd.xlane.f32.xlu0 %v104
    %v106 = vpop.xlane.xlu0 %105
    %v107 = vadd.f32 %v83, %v84
    %108 = vadd.xlane.f32.xlu0 %v107
    %v109 = vpop.xlane.xlu0 %108
    %v110 = vadd.f32 %v85, %v86
    %111 = vadd.xlane.f32.xlu0 %v110
    %v112 = vpop.xlane.xlu0 %111
    %v113 = vrcp.pop 256.0
    %v114 = vmul.f32 %v91, %v113
    %v115 = vmul.f32 %v94, %v113
    %v116 = vmul.f32 %v97, %v113
    %v117 = vmul.f32 %v100, %v113
    %v118 = vmul.f32 %v103, %v113
    %v119 = vmul.f32 %v106, %v113
    %v120 = vmul.f32 %v109, %v113
    %v121 = vmul.f32 %v112, %v113
    %v122 = vsub.f32 %v71, %v114
    %v123 = vsub.f32 %v72, %v114
    %v124 = vsub.f32 %v73, %v115
    %v125 = vsub.f32 %v74, %v115
    %v126 = vsub.f32 %v75, %v116
    %v127 = vsub.f32 %v76, %v116
    %v128 = vsub.f32 %v77, %v117
    %v129 = vsub.f32 %v78, %v117
    %v130 = vsub.f32 %v79, %v118
    %v131 = vsub.f32 %v80, %v118
    %v132 = vsub.f32 %v81, %v119
    %v133 = vsub.f32 %v82, %v119
    %v134 = vsub.f32 %v83, %v120
    %v135 = vsub.f32 %v84, %v120
    %v136 = vsub.f32 %v85, %v121
    %v137 = vsub.f32 %v86, %v121
    %v138 = vmul.f32 %v122, %v122
    %v139 = vmul.f32 %v123, %v123
    %v140 = vmul.f32 %v124, %v124
    %v141 = vmul.f32 %v125, %v125
    %v142 = vmul.f32 %v126, %v126
    %v143 = vmul.f32 %v127, %v127
    %v144 = vmul.f32 %v128, %v128
    %v145 = vmul.f32 %v129, %v129
    %v146 = vmul.f32 %v130, %v130
    %v147 = vmul.f32 %v131, %v131
    %v148 = vmul.f32 %v132, %v132
    %v149 = vmul.f32 %v133, %v133
    %v150 = vmul.f32 %v134, %v134
    %v151 = vmul.f32 %v135, %v135
    %v152 = vmul.f32 %v136, %v136
    %v153 = vmul.f32 %v137, %v137
    %v154 = vadd.f32 %v138, %v139
    %155 = vadd.xlane.f32.xlu0 %v154
    %v156 = vpop.xlane.xlu0 %155
    %v157 = vadd.f32 %v140, %v141
    %158 = vadd.xlane.f32.xlu0 %v157
    %v159 = vpop.xlane.xlu0 %158
    %v160 = vadd.f32 %v142, %v143
    %161 = vadd.xlane.f32.xlu0 %v160
    %v162 = vpop.xlane.xlu0 %161
    %v163 = vadd.f32 %v144, %v145
    %164 = vadd.xlane.f32.xlu0 %v163
    %v165 = vpop.xlane.xlu0 %164
    %v166 = vadd.f32 %v146, %v147
    %167 = vadd.xlane.f32.xlu0 %v166
    %v168 = vpop.xlane.xlu0 %167
    %v169 = vadd.f32 %v148, %v149
    %170 = vadd.xlane.f32.xlu0 %v169
    %v171 = vpop.xlane.xlu0 %170
    %v172 = vadd.f32 %v150, %v151
    %173 = vadd.xlane.f32.xlu0 %v172
    %v174 = vpop.xlane.xlu0 %173
    %v175 = vadd.f32 %v152, %v153
    %176 = vadd.xlane.f32.xlu0 %v175
    %v177 = vpop.xlane.xlu0 %176
    %v178 = vmul.f32 %v156, %v113
    %v179 = vmul.f32 %v159, %v113
    %v180 = vmul.f32 %v162, %v113
    %v181 = vmul.f32 %v165, %v113
    %v182 = vmul.f32 %v168, %v113
    %v183 = vmul.f32 %v171, %v113
    %v184 = vmul.f32 %v174, %v113
    %v185 = vmul.f32 %v177, %v113
    %v186 = vadd.f32 %v178, 1e-05
    %v187 = vadd.f32 %v179, 1e-05
    %v188 = vadd.f32 %v180, 1e-05
    %v189 = vadd.f32 %v181, 1e-05
    %v190 = vadd.f32 %v182, 1e-05
    %v191 = vadd.f32 %v183, 1e-05
    %v192 = vadd.f32 %v184, 1e-05
    %v193 = vadd.f32 %v185, 1e-05
    %v194 = vrsqrt.pop %v186
    %v195 = vrsqrt.pop %v187
    %v196 = vrsqrt.pop %v188
    %v197 = vrsqrt.pop %v189
    %v198 = vrsqrt.pop %v190
    %v199 = vrsqrt.pop %v191
    %v200 = vrsqrt.pop %v192
    %v201 = vrsqrt.pop %v193
    %v202 = vmul.f32 %v122, %v194
    %v203 = vmul.f32 %v123, %v194
    %v204 = vmul.f32 %v124, %v195
    %v205 = vmul.f32 %v125, %v195
    %v206 = vmul.f32 %v126, %v196
    %v207 = vmul.f32 %v127, %v196
    %v208 = vmul.f32 %v128, %v197
    %v209 = vmul.f32 %v129, %v197
    %v210 = vmul.f32 %v130, %v198
    %v211 = vmul.f32 %v131, %v198
    %v212 = vmul.f32 %v132, %v199
    %v213 = vmul.f32 %v133, %v199
    %v214 = vmul.f32 %v134, %v200
    %v215 = vmul.f32 %v135, %v200
    %v216 = vmul.f32 %v136, %v201
    %v217 = vmul.f32 %v137, %v201
    %v218 = vlaneseq
    %v219 = vshrl.u32 %v218, 7
    %v220 = vsub.s32 0, %v219
    %v221 = vrot.slane %v87, %v220
    %v222 = vlaneseq
    %v223 = vshrl.u32 %v222, 7
    %v224 = vsub.s32 0, %v223
    %v225 = vrot.slane %v88, %v224
    %v226 = vmul.f32 %v202, %v221
    %v227 = vmul.f32 %v203, %v225
    %v228 = vmul.f32 %v204, %v221
    %v229 = vmul.f32 %v205, %v225
    %v230 = vmul.f32 %v206, %v221
    %v231 = vmul.f32 %v207, %v225
    %v232 = vmul.f32 %v208, %v221
    %v233 = vmul.f32 %v209, %v225
    %v234 = vmul.f32 %v210, %v221
    %v235 = vmul.f32 %v211, %v225
    %v236 = vmul.f32 %v212, %v221
    %v237 = vmul.f32 %v213, %v225
    %v238 = vmul.f32 %v214, %v221
    %v239 = vmul.f32 %v215, %v225
    %v240 = vmul.f32 %v216, %v221
    %v241 = vmul.f32 %v217, %v225
    %v242 = vlaneseq
    %v243 = vshrl.u32 %v242, 7
    %v244 = vsub.s32 1, %v243
    %v245 = vrot.slane %v87, %v244
    %v246 = vlaneseq
    %v247 = vshrl.u32 %v246, 7
    %v248 = vsub.s32 1, %v247
    %v249 = vrot.slane %v88, %v248
    %v250 = vadd.f32 %v226, %v245
    %v251 = vadd.f32 %v227, %v249
    %v252 = vadd.f32 %v228, %v245
    %v253 = vadd.f32 %v229, %v249
    %v254 = vadd.f32 %v230, %v245
    %v255 = vadd.f32 %v231, %v249
    %v256 = vadd.f32 %v232, %v245
    %v257 = vadd.f32 %v233, %v249
    %v258 = vadd.f32 %v234, %v245
    %v259 = vadd.f32 %v235, %v249
    %v260 = vadd.f32 %v236, %v245
    %v261 = vadd.f32 %v237, %v249
    %v262 = vadd.f32 %v238, %v245
    %v263 = vadd.f32 %v239, %v249
    %v264 = vadd.f32 %v240, %v245
    %v265 = vadd.f32 %v241, %v249
    %v266 = vmax.f32 %v250, 0.0
    %v267 = vmax.f32 %v251, 0.0
    %v268 = vmax.f32 %v252, 0.0
    %v269 = vmax.f32 %v253, 0.0
    %v270 = vmax.f32 %v254, 0.0
    %v271 = vmax.f32 %v255, 0.0
    %v272 = vmax.f32 %v256, 0.0
    %v273 = vmax.f32 %v257, 0.0
    %v274 = vmax.f32 %v258, 0.0
    %v275 = vmax.f32 %v259, 0.0
    %v276 = vmax.f32 %v260, 0.0
    %v277 = vmax.f32 %v261, 0.0
    %v278 = vmax.f32 %v262, 0.0
    %v279 = vmax.f32 %v263, 0.0
    %v280 = vmax.f32 %v264, 0.0
    %v281 = vmax.f32 %v265, 0.0
    %v282 = vpack.c.bf16 %v268, %v266
    %v283 = vpack.c.bf16 %v269, %v267
    %v284 = vpack.c.bf16 %v272, %v270
    %v285 = vpack.c.bf16 %v273, %v271
    %v286 = vpack.c.bf16 %v276, %v274
    %v287 = vpack.c.bf16 %v277, %v275
    %v288 = vpack.c.bf16 %v280, %v278
    %v289 = vpack.c.bf16 %v281, %v279
    %v290 = vld [vmem:[#allocation7] sm:$0xff]
    %v291 = vld [vmem:[#allocation7 + $0x8] sm:$0xff]
    %v292 = vld [vmem:[#allocation7 + $0x10] sm:$0xff]
    %v293 = vld [vmem:[#allocation7 + $0x18] sm:$0xff]
    %v294 = vld [vmem:[#allocation7 + $0x20] sm:$0xff]
    %v295 = vld [vmem:[#allocation7 + $0x28] sm:$0xff]
    %v296 = vld [vmem:[#allocation7 + $0x30] sm:$0xff]
    %v297 = vld [vmem:[#allocation7 + $0x38] sm:$0xff]
    %v298 = vld [vmem:[#allocation7 + $0x40] sm:$0xff]
    %v299 = vld [vmem:[#allocation7 + $0x48] sm:$0xff]
    %v300 = vld [vmem:[#allocation7 + $0x50] sm:$0xff]
    %v301 = vld [vmem:[#allocation7 + $0x58] sm:$0xff]
    %v302 = vld [vmem:[#allocation7 + $0x60] sm:$0xff]
    %v303 = vld [vmem:[#allocation7 + $0x68] sm:$0xff]
    %v304 = vld [vmem:[#allocation7 + $0x70] sm:$0xff]
    %v305 = vld [vmem:[#allocation7 + $0x78] sm:$0xff]
    %v306 = vld [vmem:[#allocation7 + $0x80] sm:$0xff]
    %v307 = vld [vmem:[#allocation7 + $0x88] sm:$0xff]
    %v308 = vld [vmem:[#allocation7 + $0x90] sm:$0xff]
    %v309 = vld [vmem:[#allocation7 + $0x98] sm:$0xff]
    %v310 = vld [vmem:[#allocation7 + $0xa0] sm:$0xff]
    %v311 = vld [vmem:[#allocation7 + $0xa8] sm:$0xff]
    %v312 = vld [vmem:[#allocation7 + $0xb0] sm:$0xff]
    %v313 = vld [vmem:[#allocation7 + $0xb8] sm:$0xff]
    %v314 = vld [vmem:[#allocation7 + $0xc0] sm:$0xff]
    %v315 = vld [vmem:[#allocation7 + $0xc8] sm:$0xff]
    %v316 = vld [vmem:[#allocation7 + $0xd0] sm:$0xff]
    %v317 = vld [vmem:[#allocation7 + $0xd8] sm:$0xff]
    %v318 = vld [vmem:[#allocation7 + $0xe0] sm:$0xff]
    %v319 = vld [vmem:[#allocation7 + $0xe8] sm:$0xff]
    %v320 = vld [vmem:[#allocation7 + $0xf0] sm:$0xff]
    %v321 = vld [vmem:[#allocation7 + $0xf8] sm:$0xff]
    %v322 = vlaneseq
    %v323 = vshrl.u32 %v322, 7
    %v324 = vsub.s32 2, %v323
    %v325 = vrot.slane %v87, %v324
    %v326 = vlaneseq
    %v327 = vshrl.u32 %v326, 7
    %v328 = vsub.s32 2, %v327
    %v329 = vrot.slane %v88, %v328
    %v362 = vunpack.c.l.b16 %v290
    %v363 = vunpack.c.h.b16 %v290
    %v364 = vunpack.c.l.b16 %v291
    %v365 = vunpack.c.h.b16 %v291
    %v366 = vunpack.c.l.b16 %v292
    %v367 = vunpack.c.h.b16 %v292
    %v368 = vunpack.c.l.b16 %v293
    %v369 = vunpack.c.h.b16 %v293
    %v370 = vunpack.c.l.b16 %v294
    %v371 = vunpack.c.h.b16 %v294
    %v372 = vunpack.c.l.b16 %v295
    %v373 = vunpack.c.h.b16 %v295
    %v374 = vunpack.c.l.b16 %v296
    %v375 = vunpack.c.h.b16 %v296
    %v376 = vunpack.c.l.b16 %v297
    %v377 = vunpack.c.h.b16 %v297
    %v378 = vunpack.c.l.b16 %v298
    %v379 = vunpack.c.h.b16 %v298
    %v380 = vunpack.c.l.b16 %v299
    %v381 = vunpack.c.h.b16 %v299
    %v382 = vunpack.c.l.b16 %v300
    %v383 = vunpack.c.h.b16 %v300
    %v384 = vunpack.c.l.b16 %v301
    %v385 = vunpack.c.h.b16 %v301
    %v386 = vunpack.c.l.b16 %v302
    %v387 = vunpack.c.h.b16 %v302
    %v388 = vunpack.c.l.b16 %v303
    %v389 = vunpack.c.h.b16 %v303
    %v390 = vunpack.c.l.b16 %v304
    %v391 = vunpack.c.h.b16 %v304
    %v392 = vunpack.c.l.b16 %v305
    %v393 = vunpack.c.h.b16 %v305
    %v394 = vunpack.c.l.b16 %v306
    %v395 = vunpack.c.h.b16 %v306
    %v396 = vunpack.c.l.b16 %v307
    %v397 = vunpack.c.h.b16 %v307
    %v398 = vunpack.c.l.b16 %v308
    %v399 = vunpack.c.h.b16 %v308
    %v400 = vunpack.c.l.b16 %v309
    %v401 = vunpack.c.h.b16 %v309
    %v402 = vunpack.c.l.b16 %v310
    %v403 = vunpack.c.h.b16 %v310
    %v404 = vunpack.c.l.b16 %v311
    %v405 = vunpack.c.h.b16 %v311
    %v406 = vunpack.c.l.b16 %v312
    %v407 = vunpack.c.h.b16 %v312
    %v408 = vunpack.c.l.b16 %v313
    %v409 = vunpack.c.h.b16 %v313
    %v410 = vunpack.c.l.b16 %v314
    %v411 = vunpack.c.h.b16 %v314
    %v412 = vunpack.c.l.b16 %v315
    %v413 = vunpack.c.h.b16 %v315
    %v414 = vunpack.c.l.b16 %v316
    %v415 = vunpack.c.h.b16 %v316
    %v416 = vunpack.c.l.b16 %v317
    %v417 = vunpack.c.h.b16 %v317
    %v418 = vunpack.c.l.b16 %v318
    %v419 = vunpack.c.h.b16 %v318
    %v420 = vunpack.c.l.b16 %v319
    %v421 = vunpack.c.h.b16 %v319
    %v422 = vunpack.c.l.b16 %v320
    %v423 = vunpack.c.h.b16 %v320
    %v424 = vunpack.c.l.b16 %v321
    %v425 = vunpack.c.h.b16 %v321
    %v426 = vpack.c.b16 %v364, %v362
    %v427 = vpack.c.b16 %v365, %v363
    %v428 = vpack.c.b16 %v368, %v366
    %v429 = vpack.c.b16 %v369, %v367
    %v430 = vpack.c.b16 %v372, %v370
    %v431 = vpack.c.b16 %v373, %v371
    %v432 = vpack.c.b16 %v376, %v374
    %v433 = vpack.c.b16 %v377, %v375
    %v434 = vpack.c.b16 %v380, %v378
    %v435 = vpack.c.b16 %v381, %v379
    %v436 = vpack.c.b16 %v384, %v382
    %v437 = vpack.c.b16 %v385, %v383
    %v438 = vpack.c.b16 %v388, %v386
    %v439 = vpack.c.b16 %v389, %v387
    %v440 = vpack.c.b16 %v392, %v390
    %v441 = vpack.c.b16 %v393, %v391
    %v442 = vpack.c.b16 %v396, %v394
    %v443 = vpack.c.b16 %v397, %v395
    %v444 = vpack.c.b16 %v400, %v398
    %v445 = vpack.c.b16 %v401, %v399
    %v446 = vpack.c.b16 %v404, %v402
    %v447 = vpack.c.b16 %v405, %v403
    %v448 = vpack.c.b16 %v408, %v406
    %v449 = vpack.c.b16 %v409, %v407
    %v450 = vpack.c.b16 %v412, %v410
    %v451 = vpack.c.b16 %v413, %v411
    %v452 = vpack.c.b16 %v416, %v414
    %v453 = vpack.c.b16 %v417, %v415
    %v454 = vpack.c.b16 %v420, %v418
    %v455 = vpack.c.b16 %v421, %v419
    %v456 = vpack.c.b16 %v424, %v422
    %v457 = vpack.c.b16 %v425, %v423
    %490 = vmatprep.subr.bf16.mxu0 %v441
    %491 = vmatpush1.bf16.msra.mxu0 %v440
    %492 = vmatprep.subr.bf16.mxu0 %v439
    %493 = vmatpush1.bf16.msra.mxu0 %v438
    %494 = vmatprep.subr.bf16.mxu0 %v437
    %495 = vmatpush1.bf16.msra.mxu0 %v436
    %496 = vmatprep.subr.bf16.mxu0 %v435
    %497 = vmatpush1.bf16.msra.mxu0 %v434
    %498 = vmatprep.subr.bf16.mxu0 %v433
    %499 = vmatpush1.bf16.msra.mxu0 %v432
    %500 = vmatprep.subr.bf16.mxu0 %v431
    %501 = vmatpush1.bf16.msra.mxu0 %v430
    %502 = vmatprep.subr.bf16.mxu0 %v429
    %503 = vmatpush1.bf16.msra.mxu0 %v428
    %504 = vmatprep.subr.bf16.mxu0 %v427
    %505 = vmatpush1.bf16.msra.mxu0 %v426
    %506 = vmatprep.subr.bf16.mxu0 %v457
    %507 = vmatpush2.bf16.msra.mxu0 %v456
    %508 = vmatprep.subr.bf16.mxu0 %v455
    %509 = vmatpush2.bf16.msra.mxu0 %v454
    %510 = vmatprep.subr.bf16.mxu0 %v453
    %511 = vmatpush2.bf16.msra.mxu0 %v452
    %512 = vmatprep.subr.bf16.mxu0 %v451
    %513 = vmatpush2.bf16.msra.mxu0 %v450
    %514 = vmatprep.subr.bf16.mxu0 %v449
    %515 = vmatpush2.bf16.msra.mxu0 %v448
    %516 = vmatprep.subr.bf16.mxu0 %v447
    %517 = vmatpush2.bf16.msra.mxu0 %v446
    %518 = vmatprep.subr.bf16.mxu0 %v445
    %519 = vmatpush2.bf16.msra.mxu0 %v444
    %520 = vmatprep.subr.bf16.mxu0 %v443
    %521 = vmatpush2.bf16.msra.mxu0 %v442
    %522 = vmatprep.mubr.bf16.mxu0 %v283
    %523 = vmatmul.mubr.bf16.gmra.mxu0 %v282
    %v524 = vpop.f32.mrf.mxu0
    %v525 = vadd.f32 %v325, %v524
    %v526 = vpop.f32.mrf.mxu0
    %v527 = vadd.f32 %v329, %v526
    %v528 = vpop.f32.mrf.mxu0
    %v529 = vadd.f32 %v325, %v528
    %v530 = vpop.f32.mrf.mxu0
    %v531 = vadd.f32 %v329, %v530
    %532 = vmatprep.mubr.bf16.mxu0 %v285
    %533 = vmatmul.mubr.bf16.gmra.mxu0 %v284
    %v534 = vpop.f32.mrf.mxu0
    %v535 = vadd.f32 %v325, %v534
    %v536 = vpop.f32.mrf.mxu0
    %v537 = vadd.f32 %v329, %v536
    %v538 = vpop.f32.mrf.mxu0
    %v539 = vadd.f32 %v325, %v538
    %v540 = vpop.f32.mrf.mxu0
    %v541 = vadd.f32 %v329, %v540
    %542 = vmatprep.mubr.bf16.mxu0 %v287
    %543 = vmatmul.mubr.bf16.gmra.mxu0 %v286
    %v544 = vpop.f32.mrf.mxu0
    %v545 = vadd.f32 %v325, %v544
    %v546 = vpop.f32.mrf.mxu0
    %v547 = vadd.f32 %v329, %v546
    %v548 = vpop.f32.mrf.mxu0
    %v549 = vadd.f32 %v325, %v548
    %v550 = vpop.f32.mrf.mxu0
    %v551 = vadd.f32 %v329, %v550
    %552 = vmatprep.mubr.bf16.mxu0 %v289
    %553 = vmatmul.mubr.bf16.gmra.mxu0 %v288
    %v554 = vpop.f32.mrf.mxu0
    %v555 = vadd.f32 %v325, %v554
    %v556 = vpop.f32.mrf.mxu0
    %v557 = vadd.f32 %v329, %v556
    %v558 = vpop.f32.mrf.mxu0
    %v559 = vadd.f32 %v325, %v558
    %v560 = vpop.f32.mrf.mxu0
    %v561 = vadd.f32 %v329, %v560
    %562 = vdwg.mxu0
    %v563 = vadd.f32 %v525, %v527
    %564 = vadd.xlane.f32.xlu0 %v563
    %v565 = vpop.xlane.xlu0 %564
    %v566 = vadd.f32 %v529, %v531
    %567 = vadd.xlane.f32.xlu0 %v566
    %v568 = vpop.xlane.xlu0 %567
    %v569 = vadd.f32 %v535, %v537
    %570 = vadd.xlane.f32.xlu0 %v569
    %v571 = vpop.xlane.xlu0 %570
    %v572 = vadd.f32 %v539, %v541
    %573 = vadd.xlane.f32.xlu0 %v572
    %v574 = vpop.xlane.xlu0 %573
    %v575 = vadd.f32 %v545, %v547
    %576 = vadd.xlane.f32.xlu0 %v575
    %v577 = vpop.xlane.xlu0 %576
    %v578 = vadd.f32 %v549, %v551
    %579 = vadd.xlane.f32.xlu0 %v578
    %v580 = vpop.xlane.xlu0 %579
    %v581 = vadd.f32 %v555, %v557
    %582 = vadd.xlane.f32.xlu0 %v581
    %v583 = vpop.xlane.xlu0 %582
    %v584 = vadd.f32 %v559, %v561
    %585 = vadd.xlane.f32.xlu0 %v584
    %v586 = vpop.xlane.xlu0 %585
    %v587 = vmul.f32 %v565, %v113
    %v588 = vmul.f32 %v568, %v113
    %v589 = vmul.f32 %v571, %v113
    %v590 = vmul.f32 %v574, %v113
    %v591 = vmul.f32 %v577, %v113
    %v592 = vmul.f32 %v580, %v113
    %v593 = vmul.f32 %v583, %v113
    %v594 = vmul.f32 %v586, %v113
    %v595 = vsub.f32 %v525, %v587
    %v596 = vsub.f32 %v527, %v587
    %v597 = vsub.f32 %v529, %v588
    %v598 = vsub.f32 %v531, %v588
    %v599 = vsub.f32 %v535, %v589
    %v600 = vsub.f32 %v537, %v589
    %v601 = vsub.f32 %v539, %v590
    %v602 = vsub.f32 %v541, %v590
    %v603 = vsub.f32 %v545, %v591
    %v604 = vsub.f32 %v547, %v591
    %v605 = vsub.f32 %v549, %v592
    %v606 = vsub.f32 %v551, %v592
    %v607 = vsub.f32 %v555, %v593
    %v608 = vsub.f32 %v557, %v593
    %v609 = vsub.f32 %v559, %v594
    %v610 = vsub.f32 %v561, %v594
    %v611 = vmul.f32 %v595, %v595
    %v612 = vmul.f32 %v596, %v596
    %v613 = vmul.f32 %v597, %v597
    %v614 = vmul.f32 %v598, %v598
    %v615 = vmul.f32 %v599, %v599
    %v616 = vmul.f32 %v600, %v600
    %v617 = vmul.f32 %v601, %v601
    %v618 = vmul.f32 %v602, %v602
    %v619 = vmul.f32 %v603, %v603
    %v620 = vmul.f32 %v604, %v604
    %v621 = vmul.f32 %v605, %v605
    %v622 = vmul.f32 %v606, %v606
    %v623 = vmul.f32 %v607, %v607
    %v624 = vmul.f32 %v608, %v608
    %v625 = vmul.f32 %v609, %v609
    %v626 = vmul.f32 %v610, %v610
    %v627 = vadd.f32 %v611, %v612
    %628 = vadd.xlane.f32.xlu0 %v627
    %v629 = vpop.xlane.xlu0 %628
    %v630 = vadd.f32 %v613, %v614
    %631 = vadd.xlane.f32.xlu0 %v630
    %v632 = vpop.xlane.xlu0 %631
    %v633 = vadd.f32 %v615, %v616
    %634 = vadd.xlane.f32.xlu0 %v633
    %v635 = vpop.xlane.xlu0 %634
    %v636 = vadd.f32 %v617, %v618
    %637 = vadd.xlane.f32.xlu0 %v636
    %v638 = vpop.xlane.xlu0 %637
    %v639 = vadd.f32 %v619, %v620
    %640 = vadd.xlane.f32.xlu0 %v639
    %v641 = vpop.xlane.xlu0 %640
    %v642 = vadd.f32 %v621, %v622
    %643 = vadd.xlane.f32.xlu0 %v642
    %v644 = vpop.xlane.xlu0 %643
    %v645 = vadd.f32 %v623, %v624
    %646 = vadd.xlane.f32.xlu0 %v645
    %v647 = vpop.xlane.xlu0 %646
    %v648 = vadd.f32 %v625, %v626
    %649 = vadd.xlane.f32.xlu0 %v648
    %v650 = vpop.xlane.xlu0 %649
    %v651 = vmul.f32 %v629, %v113
    %v652 = vmul.f32 %v632, %v113
    %v653 = vmul.f32 %v635, %v113
    %v654 = vmul.f32 %v638, %v113
    %v655 = vmul.f32 %v641, %v113
    %v656 = vmul.f32 %v644, %v113
    %v657 = vmul.f32 %v647, %v113
    %v658 = vmul.f32 %v650, %v113
    %v659 = vadd.f32 %v651, 1e-05
    %v660 = vadd.f32 %v652, 1e-05
    %v661 = vadd.f32 %v653, 1e-05
    %v662 = vadd.f32 %v654, 1e-05
    %v663 = vadd.f32 %v655, 1e-05
    %v664 = vadd.f32 %v656, 1e-05
    %v665 = vadd.f32 %v657, 1e-05
    %v666 = vadd.f32 %v658, 1e-05
    %v667 = vrsqrt.pop %v659
    %v668 = vrsqrt.pop %v660
    %v669 = vrsqrt.pop %v661
    %v670 = vrsqrt.pop %v662
    %v671 = vrsqrt.pop %v663
    %v672 = vrsqrt.pop %v664
    %v673 = vrsqrt.pop %v665
    %v674 = vrsqrt.pop %v666
    %v675 = vmul.f32 %v595, %v667
    %v676 = vmul.f32 %v596, %v667
    %v677 = vmul.f32 %v597, %v668
    %v678 = vmul.f32 %v598, %v668
    %v679 = vmul.f32 %v599, %v669
    %v680 = vmul.f32 %v600, %v669
    %v681 = vmul.f32 %v601, %v670
    %v682 = vmul.f32 %v602, %v670
    %v683 = vmul.f32 %v603, %v671
    %v684 = vmul.f32 %v604, %v671
    %v685 = vmul.f32 %v605, %v672
    %v686 = vmul.f32 %v606, %v672
    %v687 = vmul.f32 %v607, %v673
    %v688 = vmul.f32 %v608, %v673
    %v689 = vmul.f32 %v609, %v674
    %v690 = vmul.f32 %v610, %v674
    %v691 = vlaneseq
    %v692 = vshrl.u32 %v691, 7
    %v693 = vsub.s32 3, %v692
    %v694 = vrot.slane %v87, %v693
    %v695 = vlaneseq
    %v696 = vshrl.u32 %v695, 7
    %v697 = vsub.s32 3, %v696
    %v698 = vrot.slane %v88, %v697
    %v699 = vmul.f32 %v675, %v694
    %v700 = vmul.f32 %v676, %v698
    %v701 = vmul.f32 %v677, %v694
    %v702 = vmul.f32 %v678, %v698
    %v703 = vmul.f32 %v679, %v694
    %v704 = vmul.f32 %v680, %v698
    %v705 = vmul.f32 %v681, %v694
    %v706 = vmul.f32 %v682, %v698
    %v707 = vmul.f32 %v683, %v694
    %v708 = vmul.f32 %v684, %v698
    %v709 = vmul.f32 %v685, %v694
    %v710 = vmul.f32 %v686, %v698
    %v711 = vmul.f32 %v687, %v694
    %v712 = vmul.f32 %v688, %v698
    %v713 = vmul.f32 %v689, %v694
    %v714 = vmul.f32 %v690, %v698
    %v715 = vlaneseq
    %v716 = vshrl.u32 %v715, 7
    %v717 = vsub.s32 4, %v716
    %v718 = vrot.slane %v87, %v717
    %v719 = vlaneseq
    %v720 = vshrl.u32 %v719, 7
    %v721 = vsub.s32 4, %v720
    %v722 = vrot.slane %v88, %v721
    %v723 = vadd.f32 %v699, %v718
    %v724 = vadd.f32 %v700, %v722
    %v725 = vadd.f32 %v701, %v718
    %v726 = vadd.f32 %v702, %v722
    %v727 = vadd.f32 %v703, %v718
    %v728 = vadd.f32 %v704, %v722
    %v729 = vadd.f32 %v705, %v718
    %v730 = vadd.f32 %v706, %v722
    %v731 = vadd.f32 %v707, %v718
    %v732 = vadd.f32 %v708, %v722
    %v733 = vadd.f32 %v709, %v718
    %v734 = vadd.f32 %v710, %v722
    %v735 = vadd.f32 %v711, %v718
    %v736 = vadd.f32 %v712, %v722
    %v737 = vadd.f32 %v713, %v718
    %v738 = vadd.f32 %v714, %v722
    %v739 = vmax.f32 %v723, 0.0
    %v740 = vmax.f32 %v724, 0.0
    %v741 = vmax.f32 %v725, 0.0
    %v742 = vmax.f32 %v726, 0.0
    %v743 = vmax.f32 %v727, 0.0
    %v744 = vmax.f32 %v728, 0.0
    %v745 = vmax.f32 %v729, 0.0
    %v746 = vmax.f32 %v730, 0.0
    %v747 = vmax.f32 %v731, 0.0
    %v748 = vmax.f32 %v732, 0.0
    %v749 = vmax.f32 %v733, 0.0
    %v750 = vmax.f32 %v734, 0.0
    %v751 = vmax.f32 %v735, 0.0
    %v752 = vmax.f32 %v736, 0.0
    %v753 = vmax.f32 %v737, 0.0
    %v754 = vmax.f32 %v738, 0.0
    %v755 = vpack.c.bf16 %v741, %v739
    %v756 = vpack.c.bf16 %v742, %v740
    %v757 = vpack.c.bf16 %v745, %v743
    %v758 = vpack.c.bf16 %v746, %v744
    %v759 = vpack.c.bf16 %v749, %v747
    %v760 = vpack.c.bf16 %v750, %v748
    %v761 = vpack.c.bf16 %v753, %v751
    %v762 = vpack.c.bf16 %v754, %v752
    %v763 = vld [vmem:[#allocation8] sm:$0xff]
    %v764 = vld [vmem:[#allocation8 + $0x8] sm:$0xff]
    %v765 = vld [vmem:[#allocation8 + $0x10] sm:$0xff]
    %v766 = vld [vmem:[#allocation8 + $0x18] sm:$0xff]
    %v767 = vld [vmem:[#allocation8 + $0x20] sm:$0xff]
    %v768 = vld [vmem:[#allocation8 + $0x28] sm:$0xff]
    %v769 = vld [vmem:[#allocation8 + $0x30] sm:$0xff]
    %v770 = vld [vmem:[#allocation8 + $0x38] sm:$0xff]
    %v771 = vld [vmem:[#allocation8 + $0x40] sm:$0xff]
    %v772 = vld [vmem:[#allocation8 + $0x48] sm:$0xff]
    %v773 = vld [vmem:[#allocation8 + $0x50] sm:$0xff]
    %v774 = vld [vmem:[#allocation8 + $0x58] sm:$0xff]
    %v775 = vld [vmem:[#allocation8 + $0x60] sm:$0xff]
    %v776 = vld [vmem:[#allocation8 + $0x68] sm:$0xff]
    %v777 = vld [vmem:[#allocation8 + $0x70] sm:$0xff]
    %v778 = vld [vmem:[#allocation8 + $0x78] sm:$0xff]
    %v779 = vld [vmem:[#allocation8 + $0x80] sm:$0xff]
    %v780 = vld [vmem:[#allocation8 + $0x88] sm:$0xff]
    %v781 = vld [vmem:[#allocation8 + $0x90] sm:$0xff]
    %v782 = vld [vmem:[#allocation8 + $0x98] sm:$0xff]
    %v783 = vld [vmem:[#allocation8 + $0xa0] sm:$0xff]
    %v784 = vld [vmem:[#allocation8 + $0xa8] sm:$0xff]
    %v785 = vld [vmem:[#allocation8 + $0xb0] sm:$0xff]
    %v786 = vld [vmem:[#allocation8 + $0xb8] sm:$0xff]
    %v787 = vld [vmem:[#allocation8 + $0xc0] sm:$0xff]
    %v788 = vld [vmem:[#allocation8 + $0xc8] sm:$0xff]
    %v789 = vld [vmem:[#allocation8 + $0xd0] sm:$0xff]
    %v790 = vld [vmem:[#allocation8 + $0xd8] sm:$0xff]
    %v791 = vld [vmem:[#allocation8 + $0xe0] sm:$0xff]
    %v792 = vld [vmem:[#allocation8 + $0xe8] sm:$0xff]
    %v793 = vld [vmem:[#allocation8 + $0xf0] sm:$0xff]
    %v794 = vld [vmem:[#allocation8 + $0xf8] sm:$0xff]
    %v795 = vlaneseq
    %v796 = vshrl.u32 %v795, 7
    %v797 = vsub.s32 5, %v796
    %v798 = vrot.slane %v87, %v797
    %v799 = vlaneseq
    %v800 = vshrl.u32 %v799, 7
    %v801 = vsub.s32 5, %v800
    %v802 = vrot.slane %v88, %v801
    %v835 = vunpack.c.l.b16 %v763
    %v836 = vunpack.c.h.b16 %v763
    %v837 = vunpack.c.l.b16 %v764
    %v838 = vunpack.c.h.b16 %v764
    %v839 = vunpack.c.l.b16 %v765
    %v840 = vunpack.c.h.b16 %v765
    %v841 = vunpack.c.l.b16 %v766
    %v842 = vunpack.c.h.b16 %v766
    %v843 = vunpack.c.l.b16 %v767
    %v844 = vunpack.c.h.b16 %v767
    %v845 = vunpack.c.l.b16 %v768
    %v846 = vunpack.c.h.b16 %v768
    %v847 = vunpack.c.l.b16 %v769
    %v848 = vunpack.c.h.b16 %v769
    %v849 = vunpack.c.l.b16 %v770
    %v850 = vunpack.c.h.b16 %v770
    %v851 = vunpack.c.l.b16 %v771
    %v852 = vunpack.c.h.b16 %v771
    %v853 = vunpack.c.l.b16 %v772
    %v854 = vunpack.c.h.b16 %v772
    %v855 = vunpack.c.l.b16 %v773
    %v856 = vunpack.c.h.b16 %v773
    %v857 = vunpack.c.l.b16 %v774
    %v858 = vunpack.c.h.b16 %v774
    %v859 = vunpack.c.l.b16 %v775
    %v860 = vunpack.c.h.b16 %v775
    %v861 = vunpack.c.l.b16 %v776
    %v862 = vunpack.c.h.b16 %v776
    %v863 = vunpack.c.l.b16 %v777
    %v864 = vunpack.c.h.b16 %v777
    %v865 = vunpack.c.l.b16 %v778
    %v866 = vunpack.c.h.b16 %v778
    %v867 = vunpack.c.l.b16 %v779
    %v868 = vunpack.c.h.b16 %v779
    %v869 = vunpack.c.l.b16 %v780
    %v870 = vunpack.c.h.b16 %v780
    %v871 = vunpack.c.l.b16 %v781
    %v872 = vunpack.c.h.b16 %v781
    %v873 = vunpack.c.l.b16 %v782
    %v874 = vunpack.c.h.b16 %v782
    %v875 = vunpack.c.l.b16 %v783
    %v876 = vunpack.c.h.b16 %v783
    %v877 = vunpack.c.l.b16 %v784
    %v878 = vunpack.c.h.b16 %v784
    %v879 = vunpack.c.l.b16 %v785
    %v880 = vunpack.c.h.b16 %v785
    %v881 = vunpack.c.l.b16 %v786
    %v882 = vunpack.c.h.b16 %v786
    %v883 = vunpack.c.l.b16 %v787
    %v884 = vunpack.c.h.b16 %v787
    %v885 = vunpack.c.l.b16 %v788
    %v886 = vunpack.c.h.b16 %v788
    %v887 = vunpack.c.l.b16 %v789
    %v888 = vunpack.c.h.b16 %v789
    %v889 = vunpack.c.l.b16 %v790
    %v890 = vunpack.c.h.b16 %v790
    %v891 = vunpack.c.l.b16 %v791
    %v892 = vunpack.c.h.b16 %v791
    %v893 = vunpack.c.l.b16 %v792
    %v894 = vunpack.c.h.b16 %v792
    %v895 = vunpack.c.l.b16 %v793
    %v896 = vunpack.c.h.b16 %v793
    %v897 = vunpack.c.l.b16 %v794
    %v898 = vunpack.c.h.b16 %v794
    %v899 = vpack.c.b16 %v837, %v835
    %v900 = vpack.c.b16 %v838, %v836
    %v901 = vpack.c.b16 %v841, %v839
    %v902 = vpack.c.b16 %v842, %v840
    %v903 = vpack.c.b16 %v845, %v843
    %v904 = vpack.c.b16 %v846, %v844
    %v905 = vpack.c.b16 %v849, %v847
    %v906 = vpack.c.b16 %v850, %v848
    %v907 = vpack.c.b16 %v853, %v851
    %v908 = vpack.c.b16 %v854, %v852
    %v909 = vpack.c.b16 %v857, %v855
    %v910 = vpack.c.b16 %v858, %v856
    %v911 = vpack.c.b16 %v861, %v859
    %v912 = vpack.c.b16 %v862, %v860
    %v913 = vpack.c.b16 %v865, %v863
    %v914 = vpack.c.b16 %v866, %v864
    %v915 = vpack.c.b16 %v869, %v867
    %v916 = vpack.c.b16 %v870, %v868
    %v917 = vpack.c.b16 %v873, %v871
    %v918 = vpack.c.b16 %v874, %v872
    %v919 = vpack.c.b16 %v877, %v875
    %v920 = vpack.c.b16 %v878, %v876
    %v921 = vpack.c.b16 %v881, %v879
    %v922 = vpack.c.b16 %v882, %v880
    %v923 = vpack.c.b16 %v885, %v883
    %v924 = vpack.c.b16 %v886, %v884
    %v925 = vpack.c.b16 %v889, %v887
    %v926 = vpack.c.b16 %v890, %v888
    %v927 = vpack.c.b16 %v893, %v891
    %v928 = vpack.c.b16 %v894, %v892
    %v929 = vpack.c.b16 %v897, %v895
    %v930 = vpack.c.b16 %v898, %v896
    %963 = vmatprep.subr.bf16.mxu0 %v914
    %964 = vmatpush1.bf16.msra.mxu0 %v913
    %965 = vmatprep.subr.bf16.mxu0 %v912
    %966 = vmatpush1.bf16.msra.mxu0 %v911
    %967 = vmatprep.subr.bf16.mxu0 %v910
    %968 = vmatpush1.bf16.msra.mxu0 %v909
    %969 = vmatprep.subr.bf16.mxu0 %v908
    %970 = vmatpush1.bf16.msra.mxu0 %v907
    %971 = vmatprep.subr.bf16.mxu0 %v906
    %972 = vmatpush1.bf16.msra.mxu0 %v905
    %973 = vmatprep.subr.bf16.mxu0 %v904
    %974 = vmatpush1.bf16.msra.mxu0 %v903
    %975 = vmatprep.subr.bf16.mxu0 %v902
    %976 = vmatpush1.bf16.msra.mxu0 %v901
    %977 = vmatprep.subr.bf16.mxu0 %v900
    %978 = vmatpush1.bf16.msra.mxu0 %v899
    %979 = vmatprep.subr.bf16.mxu0 %v930
    %980 = vmatpush2.bf16.msra.mxu0 %v929
    %981 = vmatprep.subr.bf16.mxu0 %v928
    %982 = vmatpush2.bf16.msra.mxu0 %v927
    %983 = vmatprep.subr.bf16.mxu0 %v926
    %984 = vmatpush2.bf16.msra.mxu0 %v925
    %985 = vmatprep.subr.bf16.mxu0 %v924
    %986 = vmatpush2.bf16.msra.mxu0 %v923
    %987 = vmatprep.subr.bf16.mxu0 %v922
    %988 = vmatpush2.bf16.msra.mxu0 %v921
    %989 = vmatprep.subr.bf16.mxu0 %v920
    %990 = vmatpush2.bf16.msra.mxu0 %v919
    %991 = vmatprep.subr.bf16.mxu0 %v918
    %992 = vmatpush2.bf16.msra.mxu0 %v917
    %993 = vmatprep.subr.bf16.mxu0 %v916
    %994 = vmatpush2.bf16.msra.mxu0 %v915
    %995 = vmatprep.mubr.bf16.mxu0 %v756
    %996 = vmatmul.mubr.bf16.gmra.mxu0 %v755
    %v997 = vpop.f32.mrf.mxu0
    %v998 = vadd.f32 %v798, %v997
    %v999 = vpop.f32.mrf.mxu0
    %v1000 = vadd.f32 %v802, %v999
    %v1001 = vpop.f32.mrf.mxu0
    %v1002 = vadd.f32 %v798, %v1001
    %v1003 = vpop.f32.mrf.mxu0
    %v1004 = vadd.f32 %v802, %v1003
    %1005 = vmatprep.mubr.bf16.mxu0 %v758
    %1006 = vmatmul.mubr.bf16.gmra.mxu0 %v757
    %v1007 = vpop.f32.mrf.mxu0
    %v1008 = vadd.f32 %v798, %v1007
    %v1009 = vpop.f32.mrf.mxu0
    %v1010 = vadd.f32 %v802, %v1009
    %v1011 = vpop.f32.mrf.mxu0
    %v1012 = vadd.f32 %v798, %v1011
    %v1013 = vpop.f32.mrf.mxu0
    %v1014 = vadd.f32 %v802, %v1013
    %1015 = vmatprep.mubr.bf16.mxu0 %v760
    %1016 = vmatmul.mubr.bf16.gmra.mxu0 %v759
    %v1017 = vpop.f32.mrf.mxu0
    %v1018 = vadd.f32 %v798, %v1017
    %v1019 = vpop.f32.mrf.mxu0
    %v1020 = vadd.f32 %v802, %v1019
    %v1021 = vpop.f32.mrf.mxu0
    %v1022 = vadd.f32 %v798, %v1021
    %v1023 = vpop.f32.mrf.mxu0
    %v1024 = vadd.f32 %v802, %v1023
    %1025 = vmatprep.mubr.bf16.mxu0 %v762
    %1026 = vmatmul.mubr.bf16.gmra.mxu0 %v761
    %v1027 = vpop.f32.mrf.mxu0
    %v1028 = vadd.f32 %v798, %v1027
    %v1029 = vpop.f32.mrf.mxu0
    %v1030 = vadd.f32 %v802, %v1029
    %v1031 = vpop.f32.mrf.mxu0
    %v1032 = vadd.f32 %v798, %v1031
    %v1033 = vpop.f32.mrf.mxu0
    %v1034 = vadd.f32 %v802, %v1033
    %1035 = vdwg.mxu0
    %v1036 = vadd.f32 %v71, %v998
    %v1037 = vadd.f32 %v72, %v1000
    %v1038 = vadd.f32 %v73, %v1002
    %v1039 = vadd.f32 %v74, %v1004
    %v1040 = vadd.f32 %v75, %v1008
    %v1041 = vadd.f32 %v76, %v1010
    %v1042 = vadd.f32 %v77, %v1012
    %v1043 = vadd.f32 %v78, %v1014
    %v1044 = vadd.f32 %v79, %v1018
    %v1045 = vadd.f32 %v80, %v1020
    %v1046 = vadd.f32 %v81, %v1022
    %v1047 = vadd.f32 %v82, %v1024
    %v1048 = vadd.f32 %v83, %v1028
    %v1049 = vadd.f32 %v84, %v1030
    %v1050 = vadd.f32 %v85, %v1032
    %v1051 = vadd.f32 %v86, %v1034
    %1052 = vst [vmem:[#allocation10] sm:$0xff] %v1036
    %1053 = vst [vmem:[#allocation10 + $0x8] sm:$0xff] %v1037
    %1054 = vst [vmem:[#allocation10 + $0x10] sm:$0xff] %v1038
    %1055 = vst [vmem:[#allocation10 + $0x18] sm:$0xff] %v1039
    %1056 = vst [vmem:[#allocation10 + $0x20] sm:$0xff] %v1040
    %1057 = vst [vmem:[#allocation10 + $0x28] sm:$0xff] %v1041
    %1058 = vst [vmem:[#allocation10 + $0x30] sm:$0xff] %v1042
    %1059 = vst [vmem:[#allocation10 + $0x38] sm:$0xff] %v1043
    %1060 = vst [vmem:[#allocation10 + $0x40] sm:$0xff] %v1044
    %1061 = vst [vmem:[#allocation10 + $0x48] sm:$0xff] %v1045
    %1062 = vst [vmem:[#allocation10 + $0x50] sm:$0xff] %v1046
    %1063 = vst [vmem:[#allocation10 + $0x58] sm:$0xff] %v1047
    %1064 = vst [vmem:[#allocation10 + $0x60] sm:$0xff] %v1048
    %1065 = vst [vmem:[#allocation10 + $0x68] sm:$0xff] %v1049
    %1066 = vst [vmem:[#allocation10 + $0x70] sm:$0xff] %v1050
    %1067 = vst [vmem:[#allocation10 + $0x78] sm:$0xff] %v1051
    // Predicated region
    $region34: #{tpu_custom_call.1} parent=1 // pred_check
      _
    $region35: #{tpu_custom_call.1} parent=1 // pred_check_branch
      %1069 = sbr.rel (0) target = $region37
    $region36: #{tpu_custom_call.1} parent=1 // pred_region
      %s1071 = ssub.s32 2048, 2048
      %1072 = vsyncadd [#allocation4], %s1071
      %s1073 = sshll.u32 [#allocation10], 4
      %s1074 = int_to_ptr.vmem [resolvable:$true] %s1073
      %1079 = dma.vmem_to_hbm [thread:$0]  %s1074, 2048, %s4, [#allocation4], 256, 256, 16
    $region37: #{tpu_custom_call.1} parent=1 // pred_fallthru
      _
    // Predicated region
    $region38: #{tpu_custom_call.1} parent=1 // pred_check
      _
    $region39: #{tpu_custom_call.1} parent=1 // pred_check_branch
      %1081 = sbr.rel (0) target = $region41
    $region40: #{tpu_custom_call.1} parent=1 // pred_region
      %1082 = dma.done [#allocation4], 2048
    $region41: #{tpu_custom_call.1} parent=1 // pred_fallthru
      _
    %1083 = vsyncpa [#allocation3], 1
    %1084 = vsyncpa [#allocation6], 1
    %1085 = vsyncpa [#allocation9], 1
    %1086 = vsyncpa [#allocation4], 1

</llo_original>
